<compile_context>
chip_gen: v7x
topology: tpu7x:2x2x1
jax: 0.10.0
libtpu: 0.0.40
codegen_flags: <defaults>
</compile_context>

<pallas_src>
import functools

import jax
import jax.numpy as jnp
from jax.experimental import pallas as pl
from jax.experimental.pallas import tpu as pltpu

LANE = 128
SUBLANE = 8


def _round_up(x, m):
    return (x + m - 1) // m * m


# ----------------------------------------------------------------------------
# Kernel
# ----------------------------------------------------------------------------
def decoder_kernel(z_ref, w1_ref, b1_ref, w2_ref, b2_ref, o_ref):
    # Cast activations to the weight dtype (bf16 by default) so both matmuls
    # are MXU-native; accumulate in f32.
    z = z_ref[...].astype(w1_ref.dtype)                              # [TB, Z]
    h = jnp.dot(z, w1_ref[...], preferred_element_type=jnp.float32)  # [TB, Hp]
    h = jnp.maximum(h + b1_ref[...], 0.0)                            # b1 is f32
    o = jnp.dot(h.astype(w2_ref.dtype), w2_ref[...],
                preferred_element_type=jnp.float32)                  # [TB, Op]
    o = jax.nn.sigmoid(o + b2_ref[...])                              # b2 is f32
    o_ref[...] = o.astype(o_ref.dtype)


# ----------------------------------------------------------------------------
# One-time parameter prep (NOT per forward call)
# ----------------------------------------------------------------------------
def prepare_decoder_params(w1, b1, w2, b2, compute_dtype=jnp.bfloat16):
    """Transpose PyTorch-layout weights (out, in) -> (in, out), zero-pad the
    hidden/output dims up to a lane multiple (lane-dense tiles, unmasked vst),
    cast weights to `compute_dtype` (bf16 => native MXU, half the DMA bytes and
    half the resident VMEM) and biases to f32 once.

    Zero padding is exact: padded hidden units are relu(0) = 0 and contribute
    nothing; padded output columns are sliced off by the wrapper.
    """
    hidden_dim, z_dim = w1.shape
    output_dim = w2.shape[0]
    hp = _round_up(hidden_dim, LANE)
    op = _round_up(output_dim, LANE)

    w1_t = jnp.zeros((z_dim, hp), compute_dtype).at[:, :hidden_dim].set(
        w1.T.astype(compute_dtype))
    w2_t = jnp.zeros((hp, op), compute_dtype).at[:hidden_dim, :output_dim].set(
        w2.T.astype(compute_dtype))
    b1_r = jnp.zeros((1, hp), jnp.float32).at[:, :hidden_dim].set(
        b1.astype(jnp.float32).reshape(1, -1))
    b2_r = jnp.zeros((1, op), jnp.float32).at[:, :output_dim].set(
        b2.astype(jnp.float32).reshape(1, -1))
    return dict(w1_t=w1_t, b1=b1_r, w2_t=w2_t, b2=b2_r, output_dim=output_dim)


# ----------------------------------------------------------------------------
# VMEM-budget-driven tile selection
# ----------------------------------------------------------------------------
# Conservative per-core budget that is safe on v5e/v6e (128 MiB physical) and
# v7x (64 MiB/core, 2 megacore shards each holding a weight copy).
_VMEM_BUDGET = 44 << 20
_VMEM_LIMIT_CAP = 60 << 20


def _weight_bytes(z_dim, hp, op, wbytes):
    # Weights single-buffered (pl.Buffered(1)); biases are f32.
    return (z_dim * hp + hp * op) * wbytes + (hp + op) * 4


def _tile_bytes(tb, z_dim, hp, op, in_bytes, out_bytes):
    zb = _round_up(max(z_dim, 1), LANE)
    acts = 2 * tb * zb * in_bytes + 2 * tb * op * out_bytes   # double-buffered
    temps = tb * hp * 4 + tb * op * 4                         # f32 h / o temps
    return acts + temps


def _pick_tb(B, z_dim, hp, op, wbytes, in_bytes, out_bytes):
    resident = _weight_bytes(z_dim, hp, op, wbytes)
    remaining = _VMEM_BUDGET - resident
    if remaining <= 0 or _tile_bytes(SUBLANE, z_dim, hp, op, in_bytes, out_bytes) > remaining:
        # TODO(synk): K-tile the hidden dim instead of failing here.
        raise ValueError("Decoder weights too large to keep VMEM-resident; "
                         "hidden-dim K-tiling not implemented.")
    tb = SUBLANE
    for cand in (1024, 512, 256, 128, 64, 32, 16, 8):
        if _tile_bytes(cand, z_dim, hp, op, in_bytes, out_bytes) <= remaining:
            tb = cand
            break
    return min(tb, _round_up(B, SUBLANE))


# ----------------------------------------------------------------------------
# Forward call
# ----------------------------------------------------------------------------
@functools.partial(jax.jit, static_argnames=("output_dim", "block_batch"))
def _decoder_call(z, w1_t, b1, w2_t, b2, output_dim, block_batch=None):
    B, z_dim = z.shape
    hp = w1_t.shape[1]
    op = w2_t.shape[1]

    wbytes = jnp.dtype(w1_t.dtype).itemsize
    in_bytes = jnp.dtype(z.dtype).itemsize
    out_bytes = in_bytes  # output dtype follows input dtype

    if block_batch is not None:
        tb = max(SUBLANE, _round_up(int(block_batch), SUBLANE))
    else:
        tb = _pick_tb(B, z_dim, hp, op, wbytes, in_bytes, out_bytes)

    # Pad batch up to a multiple of tb (keeps tiles 8-aligned / VMEM bounded
    # for odd batches); padded rows are sliced off below.
    Bp = _round_up(B, tb)
    if Bp != B:
        z = jnp.pad(z, ((0, Bp - B), (0, 0)))
    grid = (Bp // tb,)

    footprint = (_weight_bytes(z_dim, hp, op, wbytes)
                 + _tile_bytes(tb, z_dim, hp, op, in_bytes, out_bytes))
    vmem_limit = min(_VMEM_LIMIT_CAP, max(32 << 20, footprint + (8 << 20)))

    resident = lambda i: (0, 0)  # weights/biases stay in VMEM across the grid
    single = pl.Buffered(1)      # constant index_map -> no double buffering

    cost = pl.CostEstimate(
        flops=2 * Bp * (z_dim * hp + hp * op),
        transcendentals=Bp * op,
        bytes_accessed=(Bp * z_dim * in_bytes
                        + (z_dim * hp + hp * op) * wbytes
                        + (hp + op) * 4
                        + Bp * op * out_bytes),
    )

    out = pl.pallas_call(
        decoder_kernel,
        out_shape=jax.ShapeDtypeStruct((Bp, op), z.dtype),
        grid_spec=pltpu.PrefetchScalarGridSpec(
            num_scalar_prefetch=0,
            grid=grid,
            in_specs=[
                pl.BlockSpec((tb, z_dim), lambda i: (i, 0)),                  # z tile
                pl.BlockSpec((z_dim, hp), resident, pipeline_mode=single),    # W1^T
                pl.BlockSpec((1, hp), resident, pipeline_mode=single),        # b1 (f32)
                pl.BlockSpec((hp, op), resident, pipeline_mode=single),       # W2^T
                pl.BlockSpec((1, op), resident, pipeline_mode=single),        # b2 (f32)
            ],
            out_specs=pl.BlockSpec((tb, op), lambda i: (i, 0)),
        ),
        compiler_params=pltpu.CompilerParams(
            dimension_semantics=("parallel",),   # megacore-shard batch on v7x
            vmem_limit_bytes=int(vmem_limit),
        ),
        cost_estimate=cost,
    )(z, w1_t, b1, w2_t, b2)

    # NOTE: this slice is a separate XLA copy (extra HBM read+write of the
    # output); it is only taken when padding was actually required.
    if Bp != B or op != output_dim:
        out = out[:B, :output_dim]
    return out


def decoder_forward(z, params, block_batch=None):
    """z: [B, z_dim]; params: output of prepare_decoder_params."""
    return _decoder_call(z, params["w1_t"], params["b1"], params["w2_t"],
                         params["b2"], output_dim=params["output_dim"],
                         block_batch=block_batch)


# ----------------------------------------------------------------------------
# Init / reference / test
# ----------------------------------------------------------------------------
def init_params(key, z_dim, hidden_dim, output_dim, dtype=jnp.float32):
    """Deterministic init mimicking nn.Linear's U(-1/sqrt(fan_in), 1/sqrt(fan_in))."""
    ks = jax.random.split(key, 4)

    def linear(kw, kb, fan_in, fan_out):
        bound = 1.0 / float(fan_in) ** 0.5
        w = jax.random.uniform(kw, (fan_out, fan_in), dtype, -bound, bound)
        b = jax.random.uniform(kb, (fan_out,), dtype, -bound, bound)
        return w, b

    w1, b1 = linear(ks[0], ks[1], z_dim, hidden_dim)       # z_hidden
    w2, b2 = linear(ks[2], ks[3], hidden_dim, output_dim)  # hidden_out
    return w1, b1, w2, b2


def _reference(z, w1, b1, w2, b2):
    h = jnp.maximum(z @ w1.T + b1, 0.0)
    return jax.nn.sigmoid(h @ w2.T + b2)


if __name__ == "__main__":
    key = jax.random.PRNGKey(0)
    k_z, k_p, k_z2 = jax.random.split(key, 3)

    batch, z_dim, hidden_dim, output_dim = 16, 16, 32, 64
    z = jax.random.normal(k_z, (batch, z_dim), jnp.float32)
    w1, b1, w2, b2 = init_params(k_p, z_dim, hidden_dim, output_dim)
    out_ref = _reference(z, w1, b1, w2, b2)

    # --- f32 parameter path: bit-tight validation, multi-block grid (grid=(2,)).
    params_f32 = prepare_decoder_params(w1, b1, w2, b2, compute_dtype=jnp.float32)
    out_f32 = decoder_forward(z, params_f32, block_batch=8)
    jax.block_until_ready(out_f32)
    assert out_f32.shape == (batch, output_dim)
    assert jnp.allclose(out_f32, out_ref, atol=1e-5, rtol=1e-5)

    # --- default bf16 parameter path (MXU-native): looser tolerance.
    params_bf16 = prepare_decoder_params(w1, b1, w2, b2)   # compute_dtype=bf16
    out_bf16 = decoder_forward(z, params_bf16)
    jax.block_until_ready(out_bf16)
    assert out_bf16.shape == (batch, output_dim)
    assert jnp.allclose(out_bf16, out_ref, atol=2e-2, rtol=2e-2)

    # --- odd batch: exercises the row-padding path (no unbounded full-batch block).
    z_odd = jax.random.normal(k_z2, (13, z_dim), jnp.float32)
    out_odd = decoder_forward(z_odd, params_f32)
    jax.block_until_ready(out_odd)
    assert out_odd.shape == (13, output_dim)
    assert jnp.allclose(out_odd, _reference(z_odd, w1, b1, w2, b2),
                        atol=1e-5, rtol=1e-5)

    print("KERNEL_OK")
</pallas_src>

<mosaic_0001>
module attributes {stable_mosaic.version = 11 : i64} {
  func.func @decoder_kernel(%arg0: i32, %arg1: memref<8x16xf32, #tpu.memory_space<vmem>>, %arg2: memref<16x128xf32, #tpu.memory_space<vmem>>, %arg3: memref<1x128xf32, #tpu.memory_space<vmem>>, %arg4: memref<128x128xf32, #tpu.memory_space<vmem>>, %arg5: memref<1x128xf32, #tpu.memory_space<vmem>>, %arg6: memref<8x128xf32, #tpu.memory_space<vmem>>) attributes {dimension_semantics = [#tpu.dimension_semantics<parallel>], iteration_bounds = array<i64: 2>, scalar_prefetch = 0 : i64, scratch_operands = 0 : i64, tpu.core_type = #tpu.core_type<tc>, window_params = [{transform_indices = @transform_0, window_bounds = array<i64: 8, 16>}, {pipeline_mode = #tpu.pipeline_mode<synchronous>, transform_indices = @transform_1, window_bounds = array<i64: 16, 128>}, {pipeline_mode = #tpu.pipeline_mode<synchronous>, transform_indices = @transform_2, window_bounds = array<i64: 1, 128>}, {pipeline_mode = #tpu.pipeline_mode<synchronous>, transform_indices = @transform_3, window_bounds = array<i64: 128, 128>}, {pipeline_mode = #tpu.pipeline_mode<synchronous>, transform_indices = @transform_4, window_bounds = array<i64: 1, 128>}, {transform_indices = @transform_5, window_bounds = array<i64: 8, 128>}]} {
    %c0 = arith.constant 0 : index
    %c0_0 = arith.constant 0 : index
    %0 = vector.load %arg1[%c0, %c0_0] : memref<8x16xf32, #tpu.memory_space<vmem>>, vector<8x16xf32>
    %c0_1 = arith.constant 0 : index
    %c0_2 = arith.constant 0 : index
    %1 = vector.load %arg2[%c0_1, %c0_2] : memref<16x128xf32, #tpu.memory_space<vmem>>, vector<16x128xf32>
    %cst = arith.constant dense<0.000000e+00> : vector<8x128xf32>
    %2 = tpu.matmul %0, %1, %cst {dimension_numbers = #tpu.dot_dimension_numbers<[1], [0], [0], [1], [0, 0, 1, 1], [], []>} : vector<8x16xf32>, vector<16x128xf32>, vector<8x128xf32> -> vector<8x128xf32>
    %c0_3 = arith.constant 0 : index
    %c0_4 = arith.constant 0 : index
    %3 = vector.load %arg3[%c0_3, %c0_4] : memref<1x128xf32, #tpu.memory_space<vmem>>, vector<1x128xf32>
    %4 = vector.broadcast %3 : vector<1x128xf32> to vector<8x128xf32>
    %5 = arith.addf %2, %4 : vector<8x128xf32>
    %cst_5 = arith.constant 0.000000e+00 : f32
    %6 = vector.broadcast %cst_5 : f32 to vector<8x128xf32>
    %7 = arith.maximumf %5, %6 : vector<8x128xf32>
    %c0_6 = arith.constant 0 : index
    %c0_7 = arith.constant 0 : index
    %8 = vector.load %arg4[%c0_6, %c0_7] : memref<128x128xf32, #tpu.memory_space<vmem>>, vector<128x128xf32>
    %cst_8 = arith.constant dense<0.000000e+00> : vector<8x128xf32>
    %9 = tpu.matmul %7, %8, %cst_8 {dimension_numbers = #tpu.dot_dimension_numbers<[1], [0], [0], [1], [0, 0, 1, 1], [], []>} : vector<8x128xf32>, vector<128x128xf32>, vector<8x128xf32> -> vector<8x128xf32>
    %c0_9 = arith.constant 0 : index
    %c0_10 = arith.constant 0 : index
    %10 = vector.load %arg5[%c0_9, %c0_10] : memref<1x128xf32, #tpu.memory_space<vmem>>, vector<1x128xf32>
    %11 = vector.broadcast %10 : vector<1x128xf32> to vector<8x128xf32>
    %12 = arith.addf %9, %11 : vector<8x128xf32>
    %13 = arith.negf %12 : vector<8x128xf32>
    %14 = math.exp %13 : vector<8x128xf32>
    %cst_11 = arith.constant 1.000000e+00 : f32
    %15 = vector.broadcast %cst_11 : f32 to vector<8x128xf32>
    %16 = arith.addf %15, %14 : vector<8x128xf32>
    %17 = arith.divf %15, %16 : vector<8x128xf32>
    %c0_12 = arith.constant 0 : index
    %c0_13 = arith.constant 0 : index
    %18 = vector.load %arg6[%c0_12, %c0_13] : memref<8x128xf32, #tpu.memory_space<vmem>>, vector<8x128xf32>
    tpu.vector_store %arg6[%c0_12, %c0_13], %17 {strides = array<i32>} : memref<8x128xf32, #tpu.memory_space<vmem>>, vector<8x128xf32>,
    return
  }
  func.func @transform_0(%arg0: i32) -> (i32, i32) {
    %c0_i32 = arith.constant 0 : i32
    %c0_i32_0 = arith.constant 0 : i32
    return %arg0, %c0_i32 : i32, i32
  }
  func.func @transform_1(%arg0: i32) -> (i32, i32) {
    %c0_i32 = arith.constant 0 : i32
    %c0_i32_0 = arith.constant 0 : i32
    %c0_i32_1 = arith.constant 0 : i32
    return %c0_i32, %c0_i32_0 : i32, i32
  }
  func.func @transform_2(%arg0: i32) -> (i32, i32) {
    %c0_i32 = arith.constant 0 : i32
    %c0_i32_0 = arith.constant 0 : i32
    %c0_i32_1 = arith.constant 0 : i32
    return %c0_i32, %c0_i32_0 : i32, i32
  }
  func.func @transform_3(%arg0: i32) -> (i32, i32) {
    %c0_i32 = arith.constant 0 : i32
    %c0_i32_0 = arith.constant 0 : i32
    %c0_i32_1 = arith.constant 0 : i32
    return %c0_i32, %c0_i32_0 : i32, i32
  }
  func.func @transform_4(%arg0: i32) -> (i32, i32) {
    %c0_i32 = arith.constant 0 : i32
    %c0_i32_0 = arith.constant 0 : i32
    %c0_i32_1 = arith.constant 0 : i32
    return %c0_i32, %c0_i32_0 : i32, i32
  }
  func.func @transform_5(%arg0: i32) -> (i32, i32) {
    %c0_i32 = arith.constant 0 : i32
    %c0_i32_0 = arith.constant 0 : i32
    return %arg0, %c0_i32 : i32, i32
  }
}

</mosaic_0001>

<llo_original>
// kernel: _decoder_call.1
$region0: #{_decoder_call.1}
  #allocation0 [shape = 'u32[]', space=smem, size = 0x4, offset = 0x4, fixed_abs, tag = 'smem constant byte address 0x4 - core index']
  #allocation1 [shape = 'u32[144,128]{1,0:T(1,128)}', space=vmem, size = 0x12000, scoped, tag = 'internal scratch']
  %s0 = inlined_call_operand.hbm [shape: f32[16,16], index: 0, kind: input, shape index: {}]
  %s1 = inlined_call_operand.hbm [shape: f32[16,128], index: 1, kind: input, shape index: {}]
  %s2 = inlined_call_operand.vmem [shape: f32[1,128], index: 2, kind: input, shape index: {}]
  %s3 = inlined_call_operand.hbm [shape: f32[128,128], index: 3, kind: input, shape index: {}]
  %s4 = inlined_call_operand.vmem [shape: f32[1,128], index: 4, kind: input, shape index: {}]
  %s5 = inlined_call_operand.hbm [shape: f32[16,128], index: 5, kind: output, shape index: {}]
  %s6 = sld [smem:[#allocation0]]
  $region65: #{_decoder_call.1} parent=0
    _
  %s8 = ssub.s32 1, %s6
  %s9 = scalar_select 0, %s8, %s6
  $region1: #{_decoder_call.1} parent=0
    #allocation2 [shape = 'u8[8192]{0}', space=vmem, size = 0x2000, scoped, tag = 'input window, operand 0']
    #allocation3 [shape = 's32[2]{0}', space=sflag, size = 0x8, scoped, tag = 'scoped memory for _decoder_call.1']
    #allocation4 [shape = 's32[2]{0}', space=sflag, size = 0x8, scoped, tag = 'scoped memory for _decoder_call.1']
    #allocation5 [shape = 'u8[8192]{0}', space=vmem, size = 0x2000, scoped, tag = 'input window, operand 1, single buffered']
    #allocation6 [shape = 's32[1]{0}', space=sflag, size = 0x4, scoped, tag = 'scoped memory for _decoder_call.1']
    #allocation7 [shape = 'u8[65536]{0}', space=vmem, size = 0x10000, scoped, tag = 'input window, operand 3, single buffered']
    #allocation8 [shape = 'u8[8192]{0}', space=vmem, size = 0x2000, scoped, tag = 'output window, operand 0']
    %10 = vsyncpa [#allocation3], 0
    %s11 = scalar_lea.sflag [#allocation3], 1
    %12 = vsyncpa %s11, 0
    %13 = vsyncpa [#allocation6], 0
    %14 = vsyncpa [#allocation4], 0
    %s15 = scalar_lea.sflag [#allocation4], 1
    %16 = vsyncpa %s15, 0
    loop: start=0, step=1, limit=4
    $region2: #{_decoder_call.1} parent=1 // loop_pre_header
      _
    $region3: #{_decoder_call.1} parent=1 // loop_header
      %s18 = sphi 0, %s22
      %p19 = scmp.ge.s32.totalorder %s18, 4
      %s28 = sphi 0, %s30
      %s31 = sphi 0, %s28
      %s32 = sphi 0, %s31
      %s48 = sphi 0, %s32
      %s52 = sphi 0, %s52
      %s54 = sphi 0, %s52
      %s55 = sphi 0, %s54
      %s69 = sphi 0, %s55
      %s73 = sphi 0, %s73
      %s75 = sphi 0, %s73
      %s76 = sphi 0, %s75
      %s90 = sphi 0, %s76
      %s94 = sphi 0, %s94
      %s96 = sphi 0, %s94
      %s97 = sphi 0, %s96
      %s111 = sphi 0, %s97
      %s115 = sphi 0, %s115
      %s117 = sphi 0, %s115
      %s118 = sphi 0, %s117
      %s132 = sphi 0, %s118
      %s138 = sphi 0, %s140
      %s141 = sphi 0, %s138
      %s142 = sphi 0, %s141
      %s158 = sphi 0, %s142
    $region4: #{_decoder_call.1} parent=1 // loop_header_branch
      %21 = sbr.rel (%p19) target = $region8
    $region5: #{_decoder_call.1} parent=1 // loop_body
      %s23 = ssub.s32 %s18, 1
      %s24 = ssub.s32 %s18, 2
      %s25 = sadd.s32 %s18, 1
      %s26 = ssub.s32 %s18, %s25
      %p27 = scmp.eq.s32.totalorder %s26, 0
      %s29 = sadd.s32 %s28, 1
      %s30 = scalar_select %p27, %s28, %s29
      %p33 = pneg %p27
      %p34 = scmp.eq.s32.totalorder %s18, 1
      %p35 = por %p33, %p34
      %p36 = scmp.ne.s32.totalorder %s28, %s31
      %p37 = scmp.eq.s32.totalorder %s18, 0
      %p38 = por %p36, %p37
      %p39 = scmp.ne.s32.totalorder %s28, %s31
      %p40 = scmp.eq.s32.totalorder %s23, 1
      %p41 = por %p39, %p40
      %p42 = scmp.ne.s32.totalorder %s31, %s32
      %p43 = scmp.eq.s32.totalorder %s23, 0
      %p44 = por %p42, %p43
      %p45 = scmp.ne.s32.totalorder %s31, %s32
      %p46 = scmp.eq.s32.totalorder %s24, 1
      %p47 = por %p45, %p46
      %p49 = scmp.ne.s32.totalorder %s32, %s48
      %p50 = scmp.eq.s32.totalorder %s24, 0
      %p51 = por %p49, %p50
      %s53 = sadd.s32 %s52, 1
      %p56 = scmp.eq.s32.totalorder %s18, 1
      %p57 = scmp.ne.s32.totalorder %s52, %s54
      %p58 = scmp.eq.s32.totalorder %s18, 0
      %p59 = por %p57, %p58
      %p60 = scmp.ne.s32.totalorder %s52, %s54
      %p61 = scmp.eq.s32.totalorder %s23, 1
      %p62 = por %p60, %p61
      %p63 = scmp.ne.s32.totalorder %s54, %s55
      %p64 = scmp.eq.s32.totalorder %s23, 0
      %p65 = por %p63, %p64
      %p66 = scmp.ne.s32.totalorder %s54, %s55
      %p67 = scmp.eq.s32.totalorder %s24, 1
      %p68 = por %p66, %p67
      %p70 = scmp.ne.s32.totalorder %s55, %s69
      %p71 = scmp.eq.s32.totalorder %s24, 0
      %p72 = por %p70, %p71
      %s74 = sadd.s32 %s73, 1
      %p77 = scmp.eq.s32.totalorder %s18, 1
      %p78 = scmp.ne.s32.totalorder %s73, %s75
      %p79 = scmp.eq.s32.totalorder %s18, 0
      %p80 = por %p78, %p79
      %p81 = scmp.ne.s32.totalorder %s73, %s75
      %p82 = scmp.eq.s32.totalorder %s23, 1
      %p83 = por %p81, %p82
      %p84 = scmp.ne.s32.totalorder %s75, %s76
      %p85 = scmp.eq.s32.totalorder %s23, 0
      %p86 = por %p84, %p85
      %p87 = scmp.ne.s32.totalorder %s75, %s76
      %p88 = scmp.eq.s32.totalorder %s24, 1
      %p89 = por %p87, %p88
      %p91 = scmp.ne.s32.totalorder %s76, %s90
      %p92 = scmp.eq.s32.totalorder %s24, 0
      %p93 = por %p91, %p92
      %s95 = sadd.s32 %s94, 1
      %p98 = scmp.eq.s32.totalorder %s18, 1
      %p99 = scmp.ne.s32.totalorder %s94, %s96
      %p100 = scmp.eq.s32.totalorder %s18, 0
      %p101 = por %p99, %p100
      %p102 = scmp.ne.s32.totalorder %s94, %s96
      %p103 = scmp.eq.s32.totalorder %s23, 1
      %p104 = por %p102, %p103
      %p105 = scmp.ne.s32.totalorder %s96, %s97
      %p106 = scmp.eq.s32.totalorder %s23, 0
      %p107 = por %p105, %p106
      %p108 = scmp.ne.s32.totalorder %s96, %s97
      %p109 = scmp.eq.s32.totalorder %s24, 1
      %p110 = por %p108, %p109
      %p112 = scmp.ne.s32.totalorder %s97, %s111
      %p113 = scmp.eq.s32.totalorder %s24, 0
      %p114 = por %p112, %p113
      %s116 = sadd.s32 %s115, 1
      %p119 = scmp.eq.s32.totalorder %s18, 1
      %p120 = scmp.ne.s32.totalorder %s115, %s117
      %p121 = scmp.eq.s32.totalorder %s18, 0
      %p122 = por %p120, %p121
      %p123 = scmp.ne.s32.totalorder %s115, %s117
      %p124 = scmp.eq.s32.totalorder %s23, 1
      %p125 = por %p123, %p124
      %p126 = scmp.ne.s32.totalorder %s117, %s118
      %p127 = scmp.eq.s32.totalorder %s23, 0
      %p128 = por %p126, %p127
      %p129 = scmp.ne.s32.totalorder %s117, %s118
      %p130 = scmp.eq.s32.totalorder %s24, 1
      %p131 = por %p129, %p130
      %p133 = scmp.ne.s32.totalorder %s118, %s132
      %p134 = scmp.eq.s32.totalorder %s24, 0
      %p135 = por %p133, %p134
      %s136 = ssub.s32 %s18, %s25
      %p137 = scmp.eq.s32.totalorder %s136, 0
      %s139 = sadd.s32 %s138, 1
      %s140 = scalar_select %p137, %s138, %s139
      %p143 = pneg %p137
      %p144 = scmp.eq.s32.totalorder %s18, 1
      %p145 = por %p143, %p144
      %p146 = scmp.ne.s32.totalorder %s138, %s141
      %p147 = scmp.eq.s32.totalorder %s18, 0
      %p148 = por %p146, %p147
      %p149 = scmp.ne.s32.totalorder %s138, %s141
      %p150 = scmp.eq.s32.totalorder %s23, 1
      %p151 = por %p149, %p150
      %p152 = scmp.ne.s32.totalorder %s141, %s142
      %p153 = scmp.eq.s32.totalorder %s23, 0
      %p154 = por %p152, %p153
      %p155 = scmp.ne.s32.totalorder %s141, %s142
      %p156 = scmp.eq.s32.totalorder %s24, 1
      %p157 = por %p155, %p156
      %p159 = scmp.ne.s32.totalorder %s142, %s158
      %p160 = scmp.eq.s32.totalorder %s24, 0
      %p161 = por %p159, %p160
      %p162 = scmp.le.s32.totalorder 1, %s18
      %p163 = scmp.lt.s32.totalorder %s18, 3
      %p164 = pnand %p162, %p163
      %p165 = pneg %p164
      // Predicated region
      $region9: #{_decoder_call.1} parent=5 // pred_check
        _
      $region10: #{_decoder_call.1} parent=5 // pred_check_branch
        %167 = sbr.rel (%p164) target = $region12
      $region11: #{_decoder_call.1} parent=5 // pred_region
        %s168 = ssub.s32 %s18, 1
        // Predicated region
        $region13: #{_decoder_call.1} parent=11 // pred_check
          %p169 = pneg %p65
        $region14: #{_decoder_call.1} parent=11 // pred_check_branch
          %171 = sbr.rel (%p169) target = $region16
        $region15: #{_decoder_call.1} parent=11 // pred_region
          %s173 = ssub.s32 256, 256
          %174 = vsyncadd [#allocation6], %s173
          %s175 = sshll.u32 [#allocation5], 4
          %s176 = int_to_ptr.vmem [resolvable:$true] %s175
          %181 = dma.hbm_to_vmem [thread:$0]  %s1, 256, %s176, [#allocation6], 128, 128, 8
        $region16: #{_decoder_call.1} parent=11 // pred_fallthru
          _
        // Predicated region
        $region17: #{_decoder_call.1} parent=11 // pred_check
          %p182 = pneg %p86
        $region18: #{_decoder_call.1} parent=11 // pred_check_branch
          %184 = sbr.rel (%p182) target = $region20
        $region19: #{_decoder_call.1} parent=11 // pred_region
          _
        $region20: #{_decoder_call.1} parent=11 // pred_fallthru
          _
        // Predicated region
        $region21: #{_decoder_call.1} parent=11 // pred_check
          %p185 = pneg %p107
        $region22: #{_decoder_call.1} parent=11 // pred_check_branch
          %187 = sbr.rel (%p185) target = $region24
        $region23: #{_decoder_call.1} parent=11 // pred_region
          %s189 = ssub.s32 2048, 2048
          %190 = vsyncadd [#allocation6], %s189
          %s191 = sshll.u32 [#allocation7], 4
          %s192 = int_to_ptr.vmem [resolvable:$true] %s191
          %197 = dma.hbm_to_vmem [thread:$0]  %s3, 2048, %s192, [#allocation6], 128, 128, 8
        $region24: #{_decoder_call.1} parent=11 // pred_fallthru
          _
        // Predicated region
        $region25: #{_decoder_call.1} parent=11 // pred_check
          %p198 = pneg %p128
        $region26: #{_decoder_call.1} parent=11 // pred_check_branch
          %200 = sbr.rel (%p198) target = $region28
        $region27: #{_decoder_call.1} parent=11 // pred_region
          _
        $region28: #{_decoder_call.1} parent=11 // pred_fallthru
          _
      $region12: #{_decoder_call.1} parent=5 // pred_fallthru
        _
      %p201 = scmp.lt.s32.totalorder %s18, 2
      // Predicated region
      $region29: #{_decoder_call.1} parent=5 // pred_check
        %p202 = pneg %p201
      $region30: #{_decoder_call.1} parent=5 // pred_check_branch
        %204 = sbr.rel (%p202) target = $region32
      $region31: #{_decoder_call.1} parent=5 // pred_region
        // Predicated region
        $region33: #{_decoder_call.1} parent=31 // pred_check
          %p205 = pneg %p38
        $region34: #{_decoder_call.1} parent=31 // pred_check_branch
          %207 = sbr.rel (%p205) target = $region36
        $region35: #{_decoder_call.1} parent=31 // pred_region
          %s208 = sand.u32 %s28, 1
          %s209 = scalar_lea.sflag [#allocation3], %s208
          %s210 = sand.u32 %s28, 1
          %s211 = smul.addr %s210, 8
          %s212 = scalar_lea.vmem [#allocation2], %s211
          %s214 = ssub.s32 128, 128
          %215 = vsyncadd %s209, %s214
          %s216 = smul.addr %s18, 128
          %s217 = scalar_lea.hbm %s0, %s216
          %s219 = sshll.u32 %s212, 4
          %s220 = int_to_ptr.vmem [resolvable:$true] %s219
          %222 = dma.hbm_to_vmem [thread:$0]  %s217, 128, %s220, %s209
        $region36: #{_decoder_call.1} parent=31 // pred_fallthru
          _
      $region32: #{_decoder_call.1} parent=5 // pred_fallthru
        _
      %p223 = scmp.le.s32.totalorder 1, %s18
      %p224 = scmp.lt.s32.totalorder %s18, 3
      %p225 = pnand %p223, %p224
      %p226 = pneg %p225
      // Predicated region
      $region37: #{_decoder_call.1} parent=5 // pred_check
        _
      $region38: #{_decoder_call.1} parent=5 // pred_check_branch
        %228 = sbr.rel (%p225) target = $region40
      $region39: #{_decoder_call.1} parent=5 // pred_region
        %s229 = ssub.s32 %s18, 1
        %s230 = sand.u32 %s31, 1
        %s231 = scalar_lea.sflag [#allocation3], %s230
        %s232 = sand.u32 %s31, 1
        %s233 = smul.addr %s232, 8
        %s234 = scalar_lea.vmem [#allocation2], %s233
        // Predicated region
        $region41: #{_decoder_call.1} parent=39 // pred_check
          %p235 = pneg %p44
        $region42: #{_decoder_call.1} parent=39 // pred_check_branch
          %237 = sbr.rel (%p235) target = $region44
        $region43: #{_decoder_call.1} parent=39 // pred_region
          %238 = dma.done %s231, 128
        $region44: #{_decoder_call.1} parent=39 // pred_fallthru
          _
        // Predicated region
        $region45: #{_decoder_call.1} parent=39 // pred_check
          %p239 = pneg %p65
        $region46: #{_decoder_call.1} parent=39 // pred_check_branch
          %241 = sbr.rel (%p239) target = $region48
        $region47: #{_decoder_call.1} parent=39 // pred_region
          %242 = dma.done [#allocation6], 256
        $region48: #{_decoder_call.1} parent=39 // pred_fallthru
          _
        // Predicated region
        $region49: #{_decoder_call.1} parent=39 // pred_check
          %p243 = pneg %p107
        $region50: #{_decoder_call.1} parent=39 // pred_check_branch
          %245 = sbr.rel (%p243) target = $region52
        $region51: #{_decoder_call.1} parent=39 // pred_region
          %246 = dma.done [#allocation6], 2048
        $region52: #{_decoder_call.1} parent=39 // pred_fallthru
          _
        %s247 = sand.u32 %s31, 1
        %s248 = scalar_lea.sflag [#allocation3], %s247
        %s249 = sand.u32 %s31, 1
        %s250 = smul.addr %s249, 8
        %s251 = scalar_lea.vmem [#allocation2], %s250
        %p252 = pneg %p44
        %p253 = pneg %p41
        %p254 = pneg %p65
        %p255 = pneg %p62
        %p256 = pneg %p86
        %p257 = pneg %p83
        %p258 = pneg %p107
        %p259 = pneg %p104
        %p260 = pneg %p128
        %p261 = pneg %p125
        %p262 = pneg %p154
        %p263 = pneg %p151
        %s264 = sand.u32 %s141, 1
        %s265 = scalar_lea.sflag [#allocation4], %s264
        %s266 = sand.u32 %s141, 1
        %s267 = smul.addr %s266, 8
        %s268 = scalar_lea.vmem [#allocation8], %s267
        %v269 = vld [vmem:[%s234] sm:$0xff]
        %v270 = vld [vmem:[#allocation5] sm:$0xff]
        %v271 = vld [vmem:[#allocation5 + $0x8] sm:$0xff]
        %v272 = vld [vmem:[%s2] sm:$0x1]
        %v274 = vlaneseq
        %v275 = vshrl.u32 %v274, 7
        %v276 = vsub.s32 0, %v275
        %v277 = vrot.slane %v272, %v276
        %vm279 = vcmask 130048
        %v281 = vsel %vm279, %v269, 0
        %283 = vmatprep.subr.mxu0 0.0
        %284 = vmatpush1.msra.mxu0 %v270
        %285 = vmatprep.subr.mxu0 0.0
        %286 = vmatpush1.msra.mxu0 %v271
        %287 = vmatprep.subr.mxu0 0.0
        %288 = vmatpush1.msra.mxu0 0.0
        %289 = vmatprep.subr.mxu0 0.0
        %290 = vmatpush1.msra.mxu0 0.0
        %291 = vmatprep.subr.mxu0 0.0
        %292 = vmatpush1.msra.mxu0 0.0
        %293 = vmatprep.subr.mxu0 0.0
        %294 = vmatpush1.msra.mxu0 0.0
        %295 = vmatprep.subr.mxu0 0.0
        %296 = vmatpush1.msra.mxu0 0.0
        %297 = vmatprep.subr.mxu0 0.0
        %298 = vmatpush1.msra.mxu0 0.0
        %299 = vmatprep.subr.mxu0 0.0
        %300 = vmatpush1.msra.mxu0 0.0
        %301 = vmatprep.subr.mxu0 0.0
        %302 = vmatpush1.msra.mxu0 0.0
        %303 = vmatprep.subr.mxu0 0.0
        %304 = vmatpush1.msra.mxu0 0.0
        %305 = vmatprep.subr.mxu0 0.0
        %306 = vmatpush1.msra.mxu0 0.0
        %307 = vmatprep.subr.mxu0 0.0
        %308 = vmatpush1.msra.mxu0 0.0
        %309 = vmatprep.subr.mxu0 0.0
        %310 = vmatpush1.msra.mxu0 0.0
        %311 = vmatprep.subr.mxu0 0.0
        %312 = vmatpush1.msra.mxu0 0.0
        %313 = vmatprep.subr.mxu0 0.0
        %314 = vmatpush1.msra.mxu0 0.0
        %315 = vmatprep.subr.mxu0 0.0
        %316 = vmatpush1.msra.mxu0 0.0
        %317 = vmatprep.subr.mxu0 0.0
        %318 = vmatpush1.msra.mxu0 0.0
        %319 = vmatprep.subr.mxu0 0.0
        %320 = vmatpush1.msra.mxu0 0.0
        %321 = vmatprep.subr.mxu0 0.0
        %322 = vmatpush1.msra.mxu0 0.0
        %323 = vmatprep.subr.mxu0 0.0
        %324 = vmatpush1.msra.mxu0 0.0
        %325 = vmatprep.subr.mxu0 0.0
        %326 = vmatpush1.msra.mxu0 0.0
        %327 = vmatprep.subr.mxu0 0.0
        %328 = vmatpush1.msra.mxu0 0.0
        %329 = vmatprep.subr.mxu0 0.0
        %330 = vmatpush1.msra.mxu0 0.0
        %331 = vmatprep.subr.mxu0 0.0
        %332 = vmatpush1.msra.mxu0 0.0
        %333 = vmatprep.subr.mxu0 0.0
        %334 = vmatpush1.msra.mxu0 0.0
        %335 = vmatprep.subr.mxu0 0.0
        %336 = vmatpush1.msra.mxu0 0.0
        %337 = vmatprep.subr.mxu0 0.0
        %338 = vmatpush1.msra.mxu0 0.0
        %339 = vmatprep.subr.mxu0 0.0
        %340 = vmatpush1.msra.mxu0 0.0
        %341 = vmatprep.subr.mxu0 0.0
        %342 = vmatpush1.msra.mxu0 0.0
        %343 = vmatprep.subr.mxu0 0.0
        %344 = vmatpush1.msra.mxu0 0.0
        %345 = vmatprep.subr.mxu0 0.0
        %346 = vmatpush1.msra.mxu0 0.0
        %347 = vmatprep.mubr.f32.mxu0 0.0
        %348 = vmatmul.mubr.f32.gmra.mrb[0].mxu0 %v281
        %v349 = vpop.f32.mrb[0].mxu0
        %v350 = vadd.f32 %v277, %v349
        %v351 = vpop.f32.mrb[0].mxu0
        %352 = vdwg.mxu0
        %v353 = vmax.f32 %v350, 0.0
        %v354 = vld [vmem:[#allocation7] sm:$0xff]
        %v355 = vld [vmem:[#allocation7 + $0x8] sm:$0xff]
        %v356 = vld [vmem:[#allocation7 + $0x10] sm:$0xff]
        %v357 = vld [vmem:[#allocation7 + $0x18] sm:$0xff]
        %v358 = vld [vmem:[#allocation7 + $0x20] sm:$0xff]
        %v359 = vld [vmem:[#allocation7 + $0x28] sm:$0xff]
        %v360 = vld [vmem:[#allocation7 + $0x30] sm:$0xff]
        %v361 = vld [vmem:[#allocation7 + $0x38] sm:$0xff]
        %v362 = vld [vmem:[#allocation7 + $0x40] sm:$0xff]
        %v363 = vld [vmem:[#allocation7 + $0x48] sm:$0xff]
        %v364 = vld [vmem:[#allocation7 + $0x50] sm:$0xff]
        %v365 = vld [vmem:[#allocation7 + $0x58] sm:$0xff]
        %v366 = vld [vmem:[#allocation7 + $0x60] sm:$0xff]
        %v367 = vld [vmem:[#allocation7 + $0x68] sm:$0xff]
        %v368 = vld [vmem:[#allocation7 + $0x70] sm:$0xff]
        %v369 = vld [vmem:[#allocation7 + $0x78] sm:$0xff]
        %v370 = vld [vmem:[%s4] sm:$0x1]
        %v372 = vlaneseq
        %v373 = vshrl.u32 %v372, 7
        %v374 = vsub.s32 0, %v373
        %v375 = vrot.slane %v370, %v374
        %377 = vmatprep.subr.mxu0 0.0
        %378 = vmatpush1.msra.mxu0 %v354
        %379 = vmatprep.subr.mxu0 0.0
        %380 = vmatpush1.msra.mxu0 %v355
        %381 = vmatprep.subr.mxu0 0.0
        %382 = vmatpush1.msra.mxu0 %v356
        %383 = vmatprep.subr.mxu0 0.0
        %384 = vmatpush1.msra.mxu0 %v357
        %385 = vmatprep.subr.mxu0 0.0
        %386 = vmatpush1.msra.mxu0 %v358
        %387 = vmatprep.subr.mxu0 0.0
        %388 = vmatpush1.msra.mxu0 %v359
        %389 = vmatprep.subr.mxu0 0.0
        %390 = vmatpush1.msra.mxu0 %v360
        %391 = vmatprep.subr.mxu0 0.0
        %392 = vmatpush1.msra.mxu0 %v361
        %393 = vmatprep.subr.mxu0 0.0
        %394 = vmatpush1.msra.mxu0 %v362
        %395 = vmatprep.subr.mxu0 0.0
        %396 = vmatpush1.msra.mxu0 %v363
        %397 = vmatprep.subr.mxu0 0.0
        %398 = vmatpush1.msra.mxu0 %v364
        %399 = vmatprep.subr.mxu0 0.0
        %400 = vmatpush1.msra.mxu0 %v365
        %401 = vmatprep.subr.mxu0 0.0
        %402 = vmatpush1.msra.mxu0 %v366
        %403 = vmatprep.subr.mxu0 0.0
        %404 = vmatpush1.msra.mxu0 %v367
        %405 = vmatprep.subr.mxu0 0.0
        %406 = vmatpush1.msra.mxu0 %v368
        %407 = vmatprep.subr.mxu0 0.0
        %408 = vmatpush1.msra.mxu0 %v369
        %409 = vmatprep.subr.mxu0 0.0
        %410 = vmatpush1.msra.mxu0 0.0
        %411 = vmatprep.subr.mxu0 0.0
        %412 = vmatpush1.msra.mxu0 0.0
        %413 = vmatprep.subr.mxu0 0.0
        %414 = vmatpush1.msra.mxu0 0.0
        %415 = vmatprep.subr.mxu0 0.0
        %416 = vmatpush1.msra.mxu0 0.0
        %417 = vmatprep.subr.mxu0 0.0
        %418 = vmatpush1.msra.mxu0 0.0
        %419 = vmatprep.subr.mxu0 0.0
        %420 = vmatpush1.msra.mxu0 0.0
        %421 = vmatprep.subr.mxu0 0.0
        %422 = vmatpush1.msra.mxu0 0.0
        %423 = vmatprep.subr.mxu0 0.0
        %424 = vmatpush1.msra.mxu0 0.0
        %425 = vmatprep.subr.mxu0 0.0
        %426 = vmatpush1.msra.mxu0 0.0
        %427 = vmatprep.subr.mxu0 0.0
        %428 = vmatpush1.msra.mxu0 0.0
        %429 = vmatprep.subr.mxu0 0.0
        %430 = vmatpush1.msra.mxu0 0.0
        %431 = vmatprep.subr.mxu0 0.0
        %432 = vmatpush1.msra.mxu0 0.0
        %433 = vmatprep.subr.mxu0 0.0
        %434 = vmatpush1.msra.mxu0 0.0
        %435 = vmatprep.subr.mxu0 0.0
        %436 = vmatpush1.msra.mxu0 0.0
        %437 = vmatprep.subr.mxu0 0.0
        %438 = vmatpush1.msra.mxu0 0.0
        %439 = vmatprep.subr.mxu0 0.0
        %440 = vmatpush1.msra.mxu0 0.0
        %441 = vmatprep.mubr.f32.mxu0 0.0
        %442 = vmatmul.mubr.f32.gmra.mrb[0].mxu0 %v353
        %v443 = vpop.f32.mrb[0].mxu0
        %v444 = vadd.f32 %v375, %v443
        %v445 = vpop.f32.mrb[0].mxu0
        %446 = vdwg.mxu0
        %v447 = vxor.u32 %v444, 2147483648
        %v448 = vmul.f32 %v447, 1.442695
        %v449 = vpow.pop %v448
        %v450 = vadd.f32 %v449, 1.0
        %v451 = vrcp.pop %v450
        %v452 = vmul.f32 1.0, %v451
        %453 = vst [vmem:[%s268] sm:$0xff] %v452
        %s454 = sand.u32 %s141, 1
        %s455 = scalar_lea.sflag [#allocation4], %s454
        %s456 = sand.u32 %s141, 1
        %s457 = smul.addr %s456, 8
        %s458 = scalar_lea.vmem [#allocation8], %s457
        // Predicated region
        $region53: #{_decoder_call.1} parent=39 // pred_check
          %p459 = pneg %p151
        $region54: #{_decoder_call.1} parent=39 // pred_check_branch
          %461 = sbr.rel (%p459) target = $region56
        $region55: #{_decoder_call.1} parent=39 // pred_region
          %s463 = ssub.s32 128, 128
          %464 = vsyncadd %s455, %s463
          %s465 = smul.addr %s23, 128
          %s466 = scalar_lea.hbm %s5, %s465
          %s468 = sshll.u32 %s458, 4
          %s469 = int_to_ptr.vmem [resolvable:$true] %s468
          %471 = dma.vmem_to_hbm [thread:$0]  %s469, 128, %s466, %s455
        $region56: #{_decoder_call.1} parent=39 // pred_fallthru
          _
      $region40: #{_decoder_call.1} parent=5 // pred_fallthru
        _
      %p472 = scmp.le.s32.totalorder 2, %s18
      // Predicated region
      $region57: #{_decoder_call.1} parent=5 // pred_check
        %p473 = pneg %p472
      $region58: #{_decoder_call.1} parent=5 // pred_check_branch
        %475 = sbr.rel (%p473) target = $region60
      $region59: #{_decoder_call.1} parent=5 // pred_region
        %s476 = ssub.s32 %s18, 2
        // Predicated region
        $region61: #{_decoder_call.1} parent=59 // pred_check
          %p477 = pneg %p157
        $region62: #{_decoder_call.1} parent=59 // pred_check_branch
          %479 = sbr.rel (%p477) target = $region64
        $region63: #{_decoder_call.1} parent=59 // pred_region
          %s480 = sand.u32 %s142, 1
          %s481 = scalar_lea.sflag [#allocation4], %s480
          %s482 = sand.u32 %s142, 1
          %s483 = smul.addr %s482, 8
          %s484 = scalar_lea.vmem [#allocation8], %s483
          %485 = dma.done %s481, 128
        $region64: #{_decoder_call.1} parent=59 // pred_fallthru
          _
      $region60: #{_decoder_call.1} parent=5 // pred_fallthru
        _
    $region6: #{_decoder_call.1} parent=1 // loop_footer
      %s22 = sadd.s32 1, %s18
    $region7: #{_decoder_call.1} parent=1 // loop_footer_branch
      %17 = sbr.rel target = $region3
    $region8: #{_decoder_call.1} parent=1 // loop_exit
      _
    %486 = vsyncpa [#allocation3], 1
    %s487 = scalar_lea.sflag [#allocation3], 1
    %488 = vsyncpa %s487, 1
    %489 = vsyncpa [#allocation6], 1
    %490 = vsyncpa [#allocation4], 1
    %s491 = scalar_lea.sflag [#allocation4], 1
    %492 = vsyncpa %s491, 1

</llo_original>
